<compile_context>
chip_gen: v7x
topology: tpu7x:2x2x1
jax: 0.10.0
libtpu: 0.0.40
codegen_flags: <defaults>
</compile_context>

<pallas_src>
import functools

import jax
import jax.numpy as jnp
from jax.experimental import pallas as pl
from jax.experimental.pallas import tpu as pltpu


def _round_up(x: int, m: int) -> int:
    return (x + m - 1) // m * m


def _actor_kernel(x_ref, w_ref, b_ref, ma_ref, out_ref, *,
                  row_off, in_dims, out_dims, bias_off):
    """One batch-tile of the fused 5-layer MLP.  All offsets/dims are static Python ints."""
    h = x_ref[...]
    n_layers = len(in_dims)
    for li in range(n_layers):                        # unrolled at trace time
        r0 = row_off[li]
        r1 = r0 + in_dims[li]
        c1 = out_dims[li]
        w = w_ref[r0:r1, 0:c1]                        # static, lane/sublane-aligned slice
        b = b_ref[:, bias_off[li]:bias_off[li] + c1]  # 128-aligned bias slice
        h = jnp.dot(h, w, preferred_element_type=jnp.float32) + b
        if li < n_layers - 1:
            h = jnp.maximum(h, 0.0)                   # ReLU (Dropout(0.1) -> identity, eval)
    out_ref[...] = ma_ref[0, 0] * jnp.tanh(h)         # SMEM scalar * lane-dense tile


def actor_forward(state, params, max_action):
    """state: [B, state_dim] (or [state_dim]) float32.
    params: dict of (in,out) weights + (1,out) biases (PyTorch (out,in) pre-transposed)."""
    if state.ndim == 1:                               # mirrors torch unsqueeze(0)
        state = state[None, :]
    state = state.astype(jnp.float32)
    B, S = state.shape
    A = params["w5"].shape[1]

    # ---- padded layer geometry (zero padding keeps the math exact) ----------------
    S_pad = _round_up(S, 8)
    raw_in = (S, 256, 128, 128, 64)
    raw_out = (256, 128, 128, 64, A)
    in_dims = (S_pad, 256, 128, 128, _round_up(64, 128))
    out_dims = (256, 128, 128, _round_up(64, 128), _round_up(A, 128))
    pack_cols = max(out_dims)

    # ---- pack weights -> one buffer, biases -> one buffer --------------------------
    w_blocks, b_blocks, row_off, bias_off = [], [], [], [0]
    r = 0
    for i in range(5):
        w = params[f"w{i + 1}"].astype(jnp.float32)
        b = params[f"b{i + 1}"].astype(jnp.float32)
        wp = jnp.zeros((in_dims[i], pack_cols), jnp.float32).at[:raw_in[i], :raw_out[i]].set(w)
        bp = jnp.zeros((1, out_dims[i]), jnp.float32).at[:, :raw_out[i]].set(b)
        w_blocks.append(wp)
        b_blocks.append(bp)
        row_off.append(r)
        r += in_dims[i]
        bias_off.append(bias_off[-1] + out_dims[i])
    wpack = jnp.concatenate(w_blocks, axis=0)         # (672, 256) for S=32
    bpack = jnp.concatenate(b_blocks, axis=1)         # (1, 768)

    # ---- batch padding / tiling -----------------------------------------------------
    B_pad = _round_up(B, 8)                           # f32 sublane granularity
    TB = B_pad if B_pad <= 256 else 256               # rows per grid step
    B_pad = _round_up(B_pad, TB)
    nb = B_pad // TB

    x = jnp.zeros((B_pad, S_pad), jnp.float32).at[:B, :S].set(state)
    max_a = jnp.full((1, 1), max_action, dtype=jnp.float32)
    A_pad = out_dims[-1]

    kernel = functools.partial(
        _actor_kernel,
        row_off=tuple(row_off), in_dims=in_dims, out_dims=out_dims,
        bias_off=tuple(bias_off))

    flops = 2 * B_pad * sum(i * o for i, o in zip(in_dims, out_dims))
    bytes_accessed = 4 * (x.size + wpack.size + bpack.size + B_pad * A_pad)

    out = pl.pallas_call(
        kernel,
        out_shape=jax.ShapeDtypeStruct((B_pad, A_pad), jnp.float32),
        grid=(nb,),
        in_specs=[
            pl.BlockSpec((TB, S_pad), lambda i: (i, 0)),        # state tile
            pl.BlockSpec(wpack.shape, lambda i: (0, 0)),        # packed weights (resident)
            pl.BlockSpec(bpack.shape, lambda i: (0, 0)),        # packed biases  (resident)
            pl.BlockSpec(memory_space=pltpu.MemorySpace.SMEM),  # max_action scalar
        ],
        out_specs=pl.BlockSpec((TB, A_pad), lambda i: (i, 0)),
        compiler_params=pltpu.CompilerParams(
            dimension_semantics=("parallel",)),
        cost_estimate=pl.CostEstimate(
            flops=int(flops),
            transcendentals=int(B_pad * A_pad),
            bytes_accessed=int(bytes_accessed)),
    )(x, wpack, bpack, max_a)

    return out[:B, :A]


def init_actor_params(key, state_dim, action_dim):
    """Deterministic synthetic init (uniform, like PyTorch's default Linear bound)."""
    dims = [(state_dim, 256), (256, 128), (128, 128), (128, 64), (64, action_dim)]
    params = {}
    for i, (fan_in, fan_out) in enumerate(dims, start=1):
        key, kw, kb = jax.random.split(key, 3)
        bound = 1.0 / jnp.sqrt(float(fan_in))
        # stored as (in, out): equivalent to PyTorch's (out, in) weight transposed.
        params[f"w{i}"] = jax.random.uniform(kw, (fan_in, fan_out), jnp.float32,
                                             minval=-bound, maxval=bound)
        params[f"b{i}"] = jax.random.uniform(kb, (1, fan_out), jnp.float32,
                                             minval=-bound, maxval=bound)
    return params


def actor_reference(state, params, max_action):
    """Pure-JAX reference for verification."""
    if state.ndim == 1:
        state = state[None, :]
    h = jnp.maximum(state @ params["w1"] + params["b1"], 0.0)
    h = jnp.maximum(h @ params["w2"] + params["b2"], 0.0)
    h = jnp.maximum(h @ params["w3"] + params["b3"], 0.0)
    h = jnp.maximum(h @ params["w4"] + params["b4"], 0.0)
    return max_action * jnp.tanh(h @ params["w5"] + params["b5"])


if __name__ == "__main__":
    STATE_DIM = 32
    ACTION_DIM = 8
    MAX_ACTION = 2.0
    BATCH = 4

    key = jax.random.PRNGKey(0)
    key, kx = jax.random.split(key)
    state = jax.random.normal(kx, (BATCH, STATE_DIM), dtype=jnp.float32)
    params = init_actor_params(key, STATE_DIM, ACTION_DIM)

    out = actor_forward(state, params, MAX_ACTION)
    out = jax.block_until_ready(out)

    ref = actor_reference(state, params, MAX_ACTION)
    assert out.shape == (BATCH, ACTION_DIM)
    assert jnp.allclose(out, ref, atol=1e-5, rtol=1e-5), "mismatch vs reference"

    print("KERNEL_OK")
</pallas_src>

<mosaic_0001>
module attributes {stable_mosaic.version = 11 : i64} {
  func.func @_actor_kernel(%arg0: i32, %arg1: memref<8x32xf32, #tpu.memory_space<vmem>>, %arg2: memref<672x256xf32, #tpu.memory_space<vmem>>, %arg3: memref<1x768xf32, #tpu.memory_space<vmem>>, %arg4: memref<1x1xf32, #tpu.memory_space<smem>>, %arg5: memref<8x128xf32, #tpu.memory_space<vmem>>) attributes {dimension_semantics = [#tpu.dimension_semantics<parallel>], iteration_bounds = array<i64: 1>, scalar_prefetch = 0 : i64, scratch_operands = 0 : i64, tpu.core_type = #tpu.core_type<tc>, window_params = [{transform_indices = @transform_0, window_bounds = array<i64: 8, 32>}, {pipeline_mode = #tpu.pipeline_mode<synchronous>, transform_indices = @transform_1, window_bounds = array<i64: 672, 256>}, {pipeline_mode = #tpu.pipeline_mode<synchronous>, transform_indices = @transform_2, window_bounds = array<i64: 1, 768>}, {transform_indices = @transform_3, window_bounds = array<i64: 1, 1>}, {transform_indices = @transform_4, window_bounds = array<i64: 8, 128>}]} {
    %c0 = arith.constant 0 : index
    %c0_0 = arith.constant 0 : index
    %0 = vector.load %arg1[%c0, %c0_0] : memref<8x32xf32, #tpu.memory_space<vmem>>, vector<8x32xf32>
    %c0_1 = arith.constant 0 : index
    %c0_2 = arith.constant 0 : index
    %1 = vector.load %arg2[%c0_1, %c0_2] : memref<672x256xf32, #tpu.memory_space<vmem>>, vector<32x256xf32>
    %c0_3 = arith.constant 0 : index
    %c0_4 = arith.constant 0 : index
    %2 = vector.load %arg3[%c0_3, %c0_4] : memref<1x768xf32, #tpu.memory_space<vmem>>, vector<1x256xf32>
    %cst = arith.constant dense<0.000000e+00> : vector<8x256xf32>
    %3 = tpu.matmul %0, %1, %cst {dimension_numbers = #tpu.dot_dimension_numbers<[1], [0], [0], [1], [0, 0, 1, 1], [], []>} : vector<8x32xf32>, vector<32x256xf32>, vector<8x256xf32> -> vector<8x256xf32>
    %4 = vector.broadcast %2 : vector<1x256xf32> to vector<8x256xf32>
    %5 = arith.addf %3, %4 : vector<8x256xf32>
    %cst_5 = arith.constant 0.000000e+00 : f32
    %6 = vector.broadcast %cst_5 : f32 to vector<8x256xf32>
    %7 = arith.maximumf %5, %6 : vector<8x256xf32>
    %c32 = arith.constant 32 : index
    %c0_6 = arith.constant 0 : index
    %8 = vector.load %arg2[%c32, %c0_6] : memref<672x256xf32, #tpu.memory_space<vmem>>, vector<256x128xf32>
    %c0_7 = arith.constant 0 : index
    %c256 = arith.constant 256 : index
    %9 = vector.load %arg3[%c0_7, %c256] : memref<1x768xf32, #tpu.memory_space<vmem>>, vector<1x128xf32>
    %cst_8 = arith.constant dense<0.000000e+00> : vector<8x128xf32>
    %10 = tpu.matmul %7, %8, %cst_8 {dimension_numbers = #tpu.dot_dimension_numbers<[1], [0], [0], [1], [0, 0, 1, 1], [], []>} : vector<8x256xf32>, vector<256x128xf32>, vector<8x128xf32> -> vector<8x128xf32>
    %11 = vector.broadcast %9 : vector<1x128xf32> to vector<8x128xf32>
    %12 = arith.addf %10, %11 : vector<8x128xf32>
    %cst_9 = arith.constant 0.000000e+00 : f32
    %13 = vector.broadcast %cst_9 : f32 to vector<8x128xf32>
    %14 = arith.maximumf %12, %13 : vector<8x128xf32>
    %c288 = arith.constant 288 : index
    %c0_10 = arith.constant 0 : index
    %15 = vector.load %arg2[%c288, %c0_10] : memref<672x256xf32, #tpu.memory_space<vmem>>, vector<128x128xf32>
    %c0_11 = arith.constant 0 : index
    %c384 = arith.constant 384 : index
    %16 = vector.load %arg3[%c0_11, %c384] : memref<1x768xf32, #tpu.memory_space<vmem>>, vector<1x128xf32>
    %cst_12 = arith.constant dense<0.000000e+00> : vector<8x128xf32>
    %17 = tpu.matmul %14, %15, %cst_12 {dimension_numbers = #tpu.dot_dimension_numbers<[1], [0], [0], [1], [0, 0, 1, 1], [], []>} : vector<8x128xf32>, vector<128x128xf32>, vector<8x128xf32> -> vector<8x128xf32>
    %18 = vector.broadcast %16 : vector<1x128xf32> to vector<8x128xf32>
    %19 = arith.addf %17, %18 : vector<8x128xf32>
    %cst_13 = arith.constant 0.000000e+00 : f32
    %20 = vector.broadcast %cst_13 : f32 to vector<8x128xf32>
    %21 = arith.maximumf %19, %20 : vector<8x128xf32>
    %c416 = arith.constant 416 : index
    %c0_14 = arith.constant 0 : index
    %22 = vector.load %arg2[%c416, %c0_14] : memref<672x256xf32, #tpu.memory_space<vmem>>, vector<128x128xf32>
    %c0_15 = arith.constant 0 : index
    %c512 = arith.constant 512 : index
    %23 = vector.load %arg3[%c0_15, %c512] : memref<1x768xf32, #tpu.memory_space<vmem>>, vector<1x128xf32>
    %cst_16 = arith.constant dense<0.000000e+00> : vector<8x128xf32>
    %24 = tpu.matmul %21, %22, %cst_16 {dimension_numbers = #tpu.dot_dimension_numbers<[1], [0], [0], [1], [0, 0, 1, 1], [], []>} : vector<8x128xf32>, vector<128x128xf32>, vector<8x128xf32> -> vector<8x128xf32>
    %25 = vector.broadcast %23 : vector<1x128xf32> to vector<8x128xf32>
    %26 = arith.addf %24, %25 : vector<8x128xf32>
    %cst_17 = arith.constant 0.000000e+00 : f32
    %27 = vector.broadcast %cst_17 : f32 to vector<8x128xf32>
    %28 = arith.maximumf %26, %27 : vector<8x128xf32>
    %c544 = arith.constant 544 : index
    %c0_18 = arith.constant 0 : index
    %29 = vector.load %arg2[%c544, %c0_18] : memref<672x256xf32, #tpu.memory_space<vmem>>, vector<128x128xf32>
    %c0_19 = arith.constant 0 : index
    %c640 = arith.constant 640 : index
    %30 = vector.load %arg3[%c0_19, %c640] : memref<1x768xf32, #tpu.memory_space<vmem>>, vector<1x128xf32>
    %cst_20 = arith.constant dense<0.000000e+00> : vector<8x128xf32>
    %31 = tpu.matmul %28, %29, %cst_20 {dimension_numbers = #tpu.dot_dimension_numbers<[1], [0], [0], [1], [0, 0, 1, 1], [], []>} : vector<8x128xf32>, vector<128x128xf32>, vector<8x128xf32> -> vector<8x128xf32>
    %32 = vector.broadcast %30 : vector<1x128xf32> to vector<8x128xf32>
    %33 = arith.addf %31, %32 : vector<8x128xf32>
    %c0_21 = arith.constant 0 : index
    %c0_22 = arith.constant 0 : index
    %34 = memref.load %arg4[%c0_21, %c0_22] : memref<1x1xf32, #tpu.memory_space<smem>>
    %35 = math.tanh %33 : vector<8x128xf32>
    %36 = vector.broadcast %34 : f32 to vector<8x128xf32>
    %37 = arith.mulf %36, %35 : vector<8x128xf32>
    %c0_23 = arith.constant 0 : index
    %c0_24 = arith.constant 0 : index
    %38 = vector.load %arg5[%c0_23, %c0_24] : memref<8x128xf32, #tpu.memory_space<vmem>>, vector<8x128xf32>
    tpu.vector_store %arg5[%c0_23, %c0_24], %37 {strides = array<i32>} : memref<8x128xf32, #tpu.memory_space<vmem>>, vector<8x128xf32>,
    return
  }
  func.func @transform_0(%arg0: i32) -> (i32, i32) {
    %c0_i32 = arith.constant 0 : i32
    %c0_i32_0 = arith.constant 0 : i32
    return %arg0, %c0_i32 : i32, i32
  }
  func.func @transform_1(%arg0: i32) -> (i32, i32) {
    %c0_i32 = arith.constant 0 : i32
    %c0_i32_0 = arith.constant 0 : i32
    %c0_i32_1 = arith.constant 0 : i32
    return %c0_i32, %c0_i32_0 : i32, i32
  }
  func.func @transform_2(%arg0: i32) -> (i32, i32) {
    %c0_i32 = arith.constant 0 : i32
    %c0_i32_0 = arith.constant 0 : i32
    %c0_i32_1 = arith.constant 0 : i32
    return %c0_i32, %c0_i32_0 : i32, i32
  }
  func.func @transform_3(%arg0: i32) -> (i32, i32) {
    %c0_i32 = arith.constant 0 : i32
    %c0_i32_0 = arith.constant 0 : i32
    %c0_i32_1 = arith.constant 0 : i32
    return %c0_i32, %c0_i32_0 : i32, i32
  }
  func.func @transform_4(%arg0: i32) -> (i32, i32) {
    %c0_i32 = arith.constant 0 : i32
    %c0_i32_0 = arith.constant 0 : i32
    return %arg0, %c0_i32 : i32, i32
  }
}

</mosaic_0001>

<llo_original>
// kernel: tpu_custom_call.1
$region0: #{tpu_custom_call.1}
  #allocation0 [shape = 'u32[]', space=smem, size = 0x4, offset = 0x4, fixed_abs, tag = 'smem constant byte address 0x4 - core index']
  #allocation1 [shape = 'u32[144,128]{1,0:T(1,128)}', space=vmem, size = 0x12000, scoped, tag = 'internal scratch']
  #allocation2 [shape = 'f32[1,1]{1,0:T(1,128)S(6)}', space=smem, size = 0x200, scoped, tag = 'scoped memory for tpu_custom_call.1']
  %s0 = inlined_call_operand.hbm [shape: f32[8,32], index: 0, kind: input, shape index: {}]
  %s1 = inlined_call_operand.hbm [shape: f32[672,256], index: 1, kind: input, shape index: {}]
  %s2 = inlined_call_operand.vmem [shape: f32[1,768], index: 2, kind: input, shape index: {}]
  %s3 = inlined_call_operand.<no memory space> [shape: f32[1,1], index: 3, kind: input, shape index: {}]
  %s4 = inlined_call_operand.hbm [shape: f32[8,128], index: 4, kind: output, shape index: {}]
  %s5 = sld [smem:[#allocation0]]
  $region34: #{tpu_custom_call.1} parent=0
    _
  %s7 = ssub.s32 1, %s5
  %s8 = scalar_select 0, %s7, %s5
  %9 = sst [smem:[#allocation2]] %s3
  $region1: #{tpu_custom_call.1} parent=0
    #allocation3 [shape = 'u8[4096]{0}', space=vmem, size = 0x1000, scoped, tag = 'input window, operand 0, single buffered']
    #allocation4 [shape = 's32[1]{0}', space=sflag, size = 0x4, scoped, tag = 'scoped memory for tpu_custom_call.1']
    #allocation5 [shape = 's32[1]{0}', space=sflag, size = 0x4, scoped, tag = 'scoped memory for tpu_custom_call.1']
    #allocation6 [shape = 'u8[688128]{0}', space=vmem, size = 0xa8000, scoped, tag = 'input window, operand 1, single buffered']
    #allocation7 [shape = 's32[1]{0}', space=sflag, size = 0x4, scoped, tag = 'scoped memory for tpu_custom_call.1']
    #allocation8 [shape = 'u8[4096]{0}', space=vmem, size = 0x1000, scoped, tag = 'output window, operand 0, single buffered']
    %10 = vsyncpa [#allocation4], 0
    %11 = vsyncpa [#allocation7], 0
    %12 = vsyncpa [#allocation5], 0
    // Predicated region
    $region2: #{tpu_custom_call.1} parent=1 // pred_check
      _
    $region3: #{tpu_custom_call.1} parent=1 // pred_check_branch
      %14 = sbr.rel (0) target = $region5
    $region4: #{tpu_custom_call.1} parent=1 // pred_region
      %s16 = ssub.s32 128, 128
      %17 = vsyncadd [#allocation4], %s16
      %s19 = sshll.u32 [#allocation3], 4
      %s20 = int_to_ptr.vmem [resolvable:$true] %s19
      %22 = dma.hbm_to_vmem [thread:$0]  %s0, 128, %s20, [#allocation4]
    $region5: #{tpu_custom_call.1} parent=1 // pred_fallthru
      _
    // Predicated region
    $region6: #{tpu_custom_call.1} parent=1 // pred_check
      _
    $region7: #{tpu_custom_call.1} parent=1 // pred_check_branch
      %24 = sbr.rel (0) target = $region9
    $region8: #{tpu_custom_call.1} parent=1 // pred_region
      %s26 = ssub.s32 21504, 21504
      %27 = vsyncadd [#allocation7], %s26
      %s28 = sshll.u32 [#allocation6], 4
      %s29 = int_to_ptr.vmem [resolvable:$true] %s28
      %34 = dma.hbm_to_vmem [thread:$0]  %s1, 21504, %s29, [#allocation7], 256, 256, 16
    $region9: #{tpu_custom_call.1} parent=1 // pred_fallthru
      _
    // Predicated region
    $region10: #{tpu_custom_call.1} parent=1 // pred_check
      _
    $region11: #{tpu_custom_call.1} parent=1 // pred_check_branch
      %36 = sbr.rel (0) target = $region13
    $region12: #{tpu_custom_call.1} parent=1 // pred_region
      _
    $region13: #{tpu_custom_call.1} parent=1 // pred_fallthru
      _
    // Predicated region
    $region14: #{tpu_custom_call.1} parent=1 // pred_check
      _
    $region15: #{tpu_custom_call.1} parent=1 // pred_check_branch
      %38 = sbr.rel (0) target = $region17
    $region16: #{tpu_custom_call.1} parent=1 // pred_region
      _
    $region17: #{tpu_custom_call.1} parent=1 // pred_fallthru
      _
    // Predicated region
    $region18: #{tpu_custom_call.1} parent=1 // pred_check
      _
    $region19: #{tpu_custom_call.1} parent=1 // pred_check_branch
      %40 = sbr.rel (0) target = $region21
    $region20: #{tpu_custom_call.1} parent=1 // pred_region
      %41 = dma.done [#allocation4], 128
    $region21: #{tpu_custom_call.1} parent=1 // pred_fallthru
      _
    // Predicated region
    $region22: #{tpu_custom_call.1} parent=1 // pred_check
      _
    $region23: #{tpu_custom_call.1} parent=1 // pred_check_branch
      %43 = sbr.rel (0) target = $region25
    $region24: #{tpu_custom_call.1} parent=1 // pred_region
      %44 = dma.done [#allocation7], 21504
    $region25: #{tpu_custom_call.1} parent=1 // pred_fallthru
      _
    %v45 = vld [vmem:[#allocation3] sm:$0xff]
    %v46 = vld [vmem:[#allocation6] sm:$0xff]
    %v47 = vld [vmem:[#allocation6 + $0x8] sm:$0xff]
    %v48 = vld [vmem:[#allocation6 + $0x10] sm:$0xff]
    %v49 = vld [vmem:[#allocation6 + $0x18] sm:$0xff]
    %v50 = vld [vmem:[#allocation6 + $0x20] sm:$0xff]
    %v51 = vld [vmem:[#allocation6 + $0x28] sm:$0xff]
    %v52 = vld [vmem:[#allocation6 + $0x30] sm:$0xff]
    %v53 = vld [vmem:[#allocation6 + $0x38] sm:$0xff]
    %v54 = vld [vmem:[%s2] sm:$0x3]
    %v56 = vlaneseq
    %v57 = vshrl.u32 %v56, 7
    %v58 = vsub.s32 0, %v57
    %v59 = vrot.slane %v54, %v58
    %v60 = vlaneseq
    %v61 = vshrl.u32 %v60, 7
    %v62 = vsub.s32 1, %v61
    %v63 = vrot.slane %v54, %v62
    %vm66 = vcmask 261120
    %v68 = vsel %vm66, %v45, 0
    %70 = vmatprep.subr.mxu0 %v47
    %71 = vmatpush1.msra.mxu0 %v46
    %72 = vmatprep.subr.mxu0 %v49
    %73 = vmatpush1.msra.mxu0 %v48
    %74 = vmatprep.subr.mxu0 %v51
    %75 = vmatpush1.msra.mxu0 %v50
    %76 = vmatprep.subr.mxu0 %v53
    %77 = vmatpush1.msra.mxu0 %v52
    %78 = vmatprep.subr.mxu0 0.0
    %79 = vmatpush1.msra.mxu0 0.0
    %80 = vmatprep.subr.mxu0 0.0
    %81 = vmatpush1.msra.mxu0 0.0
    %82 = vmatprep.subr.mxu0 0.0
    %83 = vmatpush1.msra.mxu0 0.0
    %84 = vmatprep.subr.mxu0 0.0
    %85 = vmatpush1.msra.mxu0 0.0
    %86 = vmatprep.subr.mxu0 0.0
    %87 = vmatpush1.msra.mxu0 0.0
    %88 = vmatprep.subr.mxu0 0.0
    %89 = vmatpush1.msra.mxu0 0.0
    %90 = vmatprep.subr.mxu0 0.0
    %91 = vmatpush1.msra.mxu0 0.0
    %92 = vmatprep.subr.mxu0 0.0
    %93 = vmatpush1.msra.mxu0 0.0
    %94 = vmatprep.subr.mxu0 0.0
    %95 = vmatpush1.msra.mxu0 0.0
    %96 = vmatprep.subr.mxu0 0.0
    %97 = vmatpush1.msra.mxu0 0.0
    %98 = vmatprep.subr.mxu0 0.0
    %99 = vmatpush1.msra.mxu0 0.0
    %100 = vmatprep.subr.mxu0 0.0
    %101 = vmatpush1.msra.mxu0 0.0
    %102 = vmatprep.subr.mxu0 0.0
    %103 = vmatpush1.msra.mxu0 0.0
    %104 = vmatprep.subr.mxu0 0.0
    %105 = vmatpush1.msra.mxu0 0.0
    %106 = vmatprep.subr.mxu0 0.0
    %107 = vmatpush1.msra.mxu0 0.0
    %108 = vmatprep.subr.mxu0 0.0
    %109 = vmatpush1.msra.mxu0 0.0
    %110 = vmatprep.subr.mxu0 0.0
    %111 = vmatpush1.msra.mxu0 0.0
    %112 = vmatprep.subr.mxu0 0.0
    %113 = vmatpush1.msra.mxu0 0.0
    %114 = vmatprep.subr.mxu0 0.0
    %115 = vmatpush1.msra.mxu0 0.0
    %116 = vmatprep.subr.mxu0 0.0
    %117 = vmatpush1.msra.mxu0 0.0
    %118 = vmatprep.subr.mxu0 0.0
    %119 = vmatpush1.msra.mxu0 0.0
    %120 = vmatprep.subr.mxu0 0.0
    %121 = vmatpush1.msra.mxu0 0.0
    %122 = vmatprep.subr.mxu0 0.0
    %123 = vmatpush1.msra.mxu0 0.0
    %124 = vmatprep.subr.mxu0 0.0
    %125 = vmatpush1.msra.mxu0 0.0
    %126 = vmatprep.subr.mxu0 0.0
    %127 = vmatpush1.msra.mxu0 0.0
    %128 = vmatprep.subr.mxu0 0.0
    %129 = vmatpush1.msra.mxu0 0.0
    %130 = vmatprep.subr.mxu0 0.0
    %131 = vmatpush1.msra.mxu0 0.0
    %132 = vmatprep.subr.mxu0 0.0
    %133 = vmatpush1.msra.mxu0 0.0
    %134 = vmatprep.mubr.f32.mxu0 0.0
    %135 = vmatmul.mubr.f32.gmra.mrb[0].mxu0 %v68
    %v136 = vpop.f32.mrb[0].mxu0
    %v137 = vadd.f32 %v59, %v136
    %v138 = vpop.f32.mrb[0].mxu0
    %v139 = vadd.f32 %v63, %v138
    %140 = vdwg.mxu0
    %v141 = vmax.f32 %v137, 0.0
    %v142 = vmax.f32 %v139, 0.0
    %v143 = vld [vmem:[#allocation6 + $0x40] sm:$0xff]
    %v144 = vld [vmem:[#allocation6 + $0x50] sm:$0xff]
    %v145 = vld [vmem:[#allocation6 + $0x60] sm:$0xff]
    %v146 = vld [vmem:[#allocation6 + $0x70] sm:$0xff]
    %v147 = vld [vmem:[#allocation6 + $0x80] sm:$0xff]
    %v148 = vld [vmem:[#allocation6 + $0x90] sm:$0xff]
    %v149 = vld [vmem:[#allocation6 + $0xa0] sm:$0xff]
    %v150 = vld [vmem:[#allocation6 + $0xb0] sm:$0xff]
    %v151 = vld [vmem:[#allocation6 + $0xc0] sm:$0xff]
    %v152 = vld [vmem:[#allocation6 + $0xd0] sm:$0xff]
    %v153 = vld [vmem:[#allocation6 + $0xe0] sm:$0xff]
    %v154 = vld [vmem:[#allocation6 + $0xf0] sm:$0xff]
    %v155 = vld [vmem:[#allocation6 + $0x100] sm:$0xff]
    %v156 = vld [vmem:[#allocation6 + $0x110] sm:$0xff]
    %v157 = vld [vmem:[#allocation6 + $0x120] sm:$0xff]
    %v158 = vld [vmem:[#allocation6 + $0x130] sm:$0xff]
    %v159 = vld [vmem:[#allocation6 + $0x140] sm:$0xff]
    %v160 = vld [vmem:[#allocation6 + $0x150] sm:$0xff]
    %v161 = vld [vmem:[#allocation6 + $0x160] sm:$0xff]
    %v162 = vld [vmem:[#allocation6 + $0x170] sm:$0xff]
    %v163 = vld [vmem:[#allocation6 + $0x180] sm:$0xff]
    %v164 = vld [vmem:[#allocation6 + $0x190] sm:$0xff]
    %v165 = vld [vmem:[#allocation6 + $0x1a0] sm:$0xff]
    %v166 = vld [vmem:[#allocation6 + $0x1b0] sm:$0xff]
    %v167 = vld [vmem:[#allocation6 + $0x1c0] sm:$0xff]
    %v168 = vld [vmem:[#allocation6 + $0x1d0] sm:$0xff]
    %v169 = vld [vmem:[#allocation6 + $0x1e0] sm:$0xff]
    %v170 = vld [vmem:[#allocation6 + $0x1f0] sm:$0xff]
    %v171 = vld [vmem:[#allocation6 + $0x200] sm:$0xff]
    %v172 = vld [vmem:[#allocation6 + $0x210] sm:$0xff]
    %v173 = vld [vmem:[#allocation6 + $0x220] sm:$0xff]
    %v174 = vld [vmem:[#allocation6 + $0x230] sm:$0xff]
    %v175 = vld [vmem:[%s2 + $0x2] sm:$0x1]
    %v177 = vlaneseq
    %v178 = vshrl.u32 %v177, 7
    %v179 = vsub.s32 0, %v178
    %v180 = vrot.slane %v175, %v179
    %182 = vmatprep.subr.mxu0 0.0
    %183 = vmatpush1.msra.mxu0 %v143
    %184 = vmatprep.subr.mxu0 0.0
    %185 = vmatpush1.msra.mxu0 %v144
    %186 = vmatprep.subr.mxu0 0.0
    %187 = vmatpush1.msra.mxu0 %v145
    %188 = vmatprep.subr.mxu0 0.0
    %189 = vmatpush1.msra.mxu0 %v146
    %190 = vmatprep.subr.mxu0 0.0
    %191 = vmatpush1.msra.mxu0 %v147
    %192 = vmatprep.subr.mxu0 0.0
    %193 = vmatpush1.msra.mxu0 %v148
    %194 = vmatprep.subr.mxu0 0.0
    %195 = vmatpush1.msra.mxu0 %v149
    %196 = vmatprep.subr.mxu0 0.0
    %197 = vmatpush1.msra.mxu0 %v150
    %198 = vmatprep.subr.mxu0 0.0
    %199 = vmatpush1.msra.mxu0 %v151
    %200 = vmatprep.subr.mxu0 0.0
    %201 = vmatpush1.msra.mxu0 %v152
    %202 = vmatprep.subr.mxu0 0.0
    %203 = vmatpush1.msra.mxu0 %v153
    %204 = vmatprep.subr.mxu0 0.0
    %205 = vmatpush1.msra.mxu0 %v154
    %206 = vmatprep.subr.mxu0 0.0
    %207 = vmatpush1.msra.mxu0 %v155
    %208 = vmatprep.subr.mxu0 0.0
    %209 = vmatpush1.msra.mxu0 %v156
    %210 = vmatprep.subr.mxu0 0.0
    %211 = vmatpush1.msra.mxu0 %v157
    %212 = vmatprep.subr.mxu0 0.0
    %213 = vmatpush1.msra.mxu0 %v158
    %214 = vmatprep.subr.mxu0 0.0
    %215 = vmatpush1.msra.mxu0 %v159
    %216 = vmatprep.subr.mxu0 0.0
    %217 = vmatpush1.msra.mxu0 %v160
    %218 = vmatprep.subr.mxu0 0.0
    %219 = vmatpush1.msra.mxu0 %v161
    %220 = vmatprep.subr.mxu0 0.0
    %221 = vmatpush1.msra.mxu0 %v162
    %222 = vmatprep.subr.mxu0 0.0
    %223 = vmatpush1.msra.mxu0 %v163
    %224 = vmatprep.subr.mxu0 0.0
    %225 = vmatpush1.msra.mxu0 %v164
    %226 = vmatprep.subr.mxu0 0.0
    %227 = vmatpush1.msra.mxu0 %v165
    %228 = vmatprep.subr.mxu0 0.0
    %229 = vmatpush1.msra.mxu0 %v166
    %230 = vmatprep.subr.mxu0 0.0
    %231 = vmatpush1.msra.mxu0 %v167
    %232 = vmatprep.subr.mxu0 0.0
    %233 = vmatpush1.msra.mxu0 %v168
    %234 = vmatprep.subr.mxu0 0.0
    %235 = vmatpush1.msra.mxu0 %v169
    %236 = vmatprep.subr.mxu0 0.0
    %237 = vmatpush1.msra.mxu0 %v170
    %238 = vmatprep.subr.mxu0 0.0
    %239 = vmatpush1.msra.mxu0 %v171
    %240 = vmatprep.subr.mxu0 0.0
    %241 = vmatpush1.msra.mxu0 %v172
    %242 = vmatprep.subr.mxu0 0.0
    %243 = vmatpush1.msra.mxu0 %v173
    %244 = vmatprep.subr.mxu0 0.0
    %245 = vmatpush1.msra.mxu0 %v174
    %246 = vmatprep.mubr.f32.mxu0 %v142
    %247 = vmatmul.mubr.f32.gmra.mrb[0].mxu0 %v141
    %v248 = vpop.f32.mrb[0].mxu0
    %v249 = vadd.f32 %v180, %v248
    %v250 = vpop.f32.mrb[0].mxu0
    %251 = vdwg.mxu0
    %v252 = vmax.f32 %v249, 0.0
    %v253 = vld [vmem:[#allocation6 + $0x240] sm:$0xff]
    %v254 = vld [vmem:[#allocation6 + $0x250] sm:$0xff]
    %v255 = vld [vmem:[#allocation6 + $0x260] sm:$0xff]
    %v256 = vld [vmem:[#allocation6 + $0x270] sm:$0xff]
    %v257 = vld [vmem:[#allocation6 + $0x280] sm:$0xff]
    %v258 = vld [vmem:[#allocation6 + $0x290] sm:$0xff]
    %v259 = vld [vmem:[#allocation6 + $0x2a0] sm:$0xff]
    %v260 = vld [vmem:[#allocation6 + $0x2b0] sm:$0xff]
    %v261 = vld [vmem:[#allocation6 + $0x2c0] sm:$0xff]
    %v262 = vld [vmem:[#allocation6 + $0x2d0] sm:$0xff]
    %v263 = vld [vmem:[#allocation6 + $0x2e0] sm:$0xff]
    %v264 = vld [vmem:[#allocation6 + $0x2f0] sm:$0xff]
    %v265 = vld [vmem:[#allocation6 + $0x300] sm:$0xff]
    %v266 = vld [vmem:[#allocation6 + $0x310] sm:$0xff]
    %v267 = vld [vmem:[#allocation6 + $0x320] sm:$0xff]
    %v268 = vld [vmem:[#allocation6 + $0x330] sm:$0xff]
    %v269 = vld [vmem:[%s2 + $0x3] sm:$0x1]
    %v271 = vlaneseq
    %v272 = vshrl.u32 %v271, 7
    %v273 = vsub.s32 0, %v272
    %v274 = vrot.slane %v269, %v273
    %276 = vmatprep.subr.mxu0 0.0
    %277 = vmatpush1.msra.mxu0 %v253
    %278 = vmatprep.subr.mxu0 0.0
    %279 = vmatpush1.msra.mxu0 %v254
    %280 = vmatprep.subr.mxu0 0.0
    %281 = vmatpush1.msra.mxu0 %v255
    %282 = vmatprep.subr.mxu0 0.0
    %283 = vmatpush1.msra.mxu0 %v256
    %284 = vmatprep.subr.mxu0 0.0
    %285 = vmatpush1.msra.mxu0 %v257
    %286 = vmatprep.subr.mxu0 0.0
    %287 = vmatpush1.msra.mxu0 %v258
    %288 = vmatprep.subr.mxu0 0.0
    %289 = vmatpush1.msra.mxu0 %v259
    %290 = vmatprep.subr.mxu0 0.0
    %291 = vmatpush1.msra.mxu0 %v260
    %292 = vmatprep.subr.mxu0 0.0
    %293 = vmatpush1.msra.mxu0 %v261
    %294 = vmatprep.subr.mxu0 0.0
    %295 = vmatpush1.msra.mxu0 %v262
    %296 = vmatprep.subr.mxu0 0.0
    %297 = vmatpush1.msra.mxu0 %v263
    %298 = vmatprep.subr.mxu0 0.0
    %299 = vmatpush1.msra.mxu0 %v264
    %300 = vmatprep.subr.mxu0 0.0
    %301 = vmatpush1.msra.mxu0 %v265
    %302 = vmatprep.subr.mxu0 0.0
    %303 = vmatpush1.msra.mxu0 %v266
    %304 = vmatprep.subr.mxu0 0.0
    %305 = vmatpush1.msra.mxu0 %v267
    %306 = vmatprep.subr.mxu0 0.0
    %307 = vmatpush1.msra.mxu0 %v268
    %308 = vmatprep.subr.mxu0 0.0
    %309 = vmatpush1.msra.mxu0 0.0
    %310 = vmatprep.subr.mxu0 0.0
    %311 = vmatpush1.msra.mxu0 0.0
    %312 = vmatprep.subr.mxu0 0.0
    %313 = vmatpush1.msra.mxu0 0.0
    %314 = vmatprep.subr.mxu0 0.0
    %315 = vmatpush1.msra.mxu0 0.0
    %316 = vmatprep.subr.mxu0 0.0
    %317 = vmatpush1.msra.mxu0 0.0
    %318 = vmatprep.subr.mxu0 0.0
    %319 = vmatpush1.msra.mxu0 0.0
    %320 = vmatprep.subr.mxu0 0.0
    %321 = vmatpush1.msra.mxu0 0.0
    %322 = vmatprep.subr.mxu0 0.0
    %323 = vmatpush1.msra.mxu0 0.0
    %324 = vmatprep.subr.mxu0 0.0
    %325 = vmatpush1.msra.mxu0 0.0
    %326 = vmatprep.subr.mxu0 0.0
    %327 = vmatpush1.msra.mxu0 0.0
    %328 = vmatprep.subr.mxu0 0.0
    %329 = vmatpush1.msra.mxu0 0.0
    %330 = vmatprep.subr.mxu0 0.0
    %331 = vmatpush1.msra.mxu0 0.0
    %332 = vmatprep.subr.mxu0 0.0
    %333 = vmatpush1.msra.mxu0 0.0
    %334 = vmatprep.subr.mxu0 0.0
    %335 = vmatpush1.msra.mxu0 0.0
    %336 = vmatprep.subr.mxu0 0.0
    %337 = vmatpush1.msra.mxu0 0.0
    %338 = vmatprep.subr.mxu0 0.0
    %339 = vmatpush1.msra.mxu0 0.0
    %340 = vmatprep.mubr.f32.mxu0 0.0
    %341 = vmatmul.mubr.f32.gmra.mrb[0].mxu0 %v252
    %v342 = vpop.f32.mrb[0].mxu0
    %v343 = vadd.f32 %v274, %v342
    %v344 = vpop.f32.mrb[0].mxu0
    %345 = vdwg.mxu0
    %v346 = vmax.f32 %v343, 0.0
    %v347 = vld [vmem:[#allocation6 + $0x340] sm:$0xff]
    %v348 = vld [vmem:[#allocation6 + $0x350] sm:$0xff]
    %v349 = vld [vmem:[#allocation6 + $0x360] sm:$0xff]
    %v350 = vld [vmem:[#allocation6 + $0x370] sm:$0xff]
    %v351 = vld [vmem:[#allocation6 + $0x380] sm:$0xff]
    %v352 = vld [vmem:[#allocation6 + $0x390] sm:$0xff]
    %v353 = vld [vmem:[#allocation6 + $0x3a0] sm:$0xff]
    %v354 = vld [vmem:[#allocation6 + $0x3b0] sm:$0xff]
    %v355 = vld [vmem:[#allocation6 + $0x3c0] sm:$0xff]
    %v356 = vld [vmem:[#allocation6 + $0x3d0] sm:$0xff]
    %v357 = vld [vmem:[#allocation6 + $0x3e0] sm:$0xff]
    %v358 = vld [vmem:[#allocation6 + $0x3f0] sm:$0xff]
    %v359 = vld [vmem:[#allocation6 + $0x400] sm:$0xff]
    %v360 = vld [vmem:[#allocation6 + $0x410] sm:$0xff]
    %v361 = vld [vmem:[#allocation6 + $0x420] sm:$0xff]
    %v362 = vld [vmem:[#allocation6 + $0x430] sm:$0xff]
    %v363 = vld [vmem:[%s2 + $0x4] sm:$0x1]
    %v365 = vlaneseq
    %v366 = vshrl.u32 %v365, 7
    %v367 = vsub.s32 0, %v366
    %v368 = vrot.slane %v363, %v367
    %370 = vmatprep.subr.mxu0 0.0
    %371 = vmatpush1.msra.mxu0 %v347
    %372 = vmatprep.subr.mxu0 0.0
    %373 = vmatpush1.msra.mxu0 %v348
    %374 = vmatprep.subr.mxu0 0.0
    %375 = vmatpush1.msra.mxu0 %v349
    %376 = vmatprep.subr.mxu0 0.0
    %377 = vmatpush1.msra.mxu0 %v350
    %378 = vmatprep.subr.mxu0 0.0
    %379 = vmatpush1.msra.mxu0 %v351
    %380 = vmatprep.subr.mxu0 0.0
    %381 = vmatpush1.msra.mxu0 %v352
    %382 = vmatprep.subr.mxu0 0.0
    %383 = vmatpush1.msra.mxu0 %v353
    %384 = vmatprep.subr.mxu0 0.0
    %385 = vmatpush1.msra.mxu0 %v354
    %386 = vmatprep.subr.mxu0 0.0
    %387 = vmatpush1.msra.mxu0 %v355
    %388 = vmatprep.subr.mxu0 0.0
    %389 = vmatpush1.msra.mxu0 %v356
    %390 = vmatprep.subr.mxu0 0.0
    %391 = vmatpush1.msra.mxu0 %v357
    %392 = vmatprep.subr.mxu0 0.0
    %393 = vmatpush1.msra.mxu0 %v358
    %394 = vmatprep.subr.mxu0 0.0
    %395 = vmatpush1.msra.mxu0 %v359
    %396 = vmatprep.subr.mxu0 0.0
    %397 = vmatpush1.msra.mxu0 %v360
    %398 = vmatprep.subr.mxu0 0.0
    %399 = vmatpush1.msra.mxu0 %v361
    %400 = vmatprep.subr.mxu0 0.0
    %401 = vmatpush1.msra.mxu0 %v362
    %402 = vmatprep.subr.mxu0 0.0
    %403 = vmatpush1.msra.mxu0 0.0
    %404 = vmatprep.subr.mxu0 0.0
    %405 = vmatpush1.msra.mxu0 0.0
    %406 = vmatprep.subr.mxu0 0.0
    %407 = vmatpush1.msra.mxu0 0.0
    %408 = vmatprep.subr.mxu0 0.0
    %409 = vmatpush1.msra.mxu0 0.0
    %410 = vmatprep.subr.mxu0 0.0
    %411 = vmatpush1.msra.mxu0 0.0
    %412 = vmatprep.subr.mxu0 0.0
    %413 = vmatpush1.msra.mxu0 0.0
    %414 = vmatprep.subr.mxu0 0.0
    %415 = vmatpush1.msra.mxu0 0.0
    %416 = vmatprep.subr.mxu0 0.0
    %417 = vmatpush1.msra.mxu0 0.0
    %418 = vmatprep.subr.mxu0 0.0
    %419 = vmatpush1.msra.mxu0 0.0
    %420 = vmatprep.subr.mxu0 0.0
    %421 = vmatpush1.msra.mxu0 0.0
    %422 = vmatprep.subr.mxu0 0.0
    %423 = vmatpush1.msra.mxu0 0.0
    %424 = vmatprep.subr.mxu0 0.0
    %425 = vmatpush1.msra.mxu0 0.0
    %426 = vmatprep.subr.mxu0 0.0
    %427 = vmatpush1.msra.mxu0 0.0
    %428 = vmatprep.subr.mxu0 0.0
    %429 = vmatpush1.msra.mxu0 0.0
    %430 = vmatprep.subr.mxu0 0.0
    %431 = vmatpush1.msra.mxu0 0.0
    %432 = vmatprep.subr.mxu0 0.0
    %433 = vmatpush1.msra.mxu0 0.0
    %434 = vmatprep.mubr.f32.mxu0 0.0
    %435 = vmatmul.mubr.f32.gmra.mrb[0].mxu0 %v346
    %v436 = vpop.f32.mrb[0].mxu0
    %v437 = vadd.f32 %v368, %v436
    %v438 = vpop.f32.mrb[0].mxu0
    %439 = vdwg.mxu0
    %v440 = vmax.f32 %v437, 0.0
    %v441 = vld [vmem:[#allocation6 + $0x440] sm:$0xff]
    %v442 = vld [vmem:[#allocation6 + $0x450] sm:$0xff]
    %v443 = vld [vmem:[#allocation6 + $0x460] sm:$0xff]
    %v444 = vld [vmem:[#allocation6 + $0x470] sm:$0xff]
    %v445 = vld [vmem:[#allocation6 + $0x480] sm:$0xff]
    %v446 = vld [vmem:[#allocation6 + $0x490] sm:$0xff]
    %v447 = vld [vmem:[#allocation6 + $0x4a0] sm:$0xff]
    %v448 = vld [vmem:[#allocation6 + $0x4b0] sm:$0xff]
    %v449 = vld [vmem:[#allocation6 + $0x4c0] sm:$0xff]
    %v450 = vld [vmem:[#allocation6 + $0x4d0] sm:$0xff]
    %v451 = vld [vmem:[#allocation6 + $0x4e0] sm:$0xff]
    %v452 = vld [vmem:[#allocation6 + $0x4f0] sm:$0xff]
    %v453 = vld [vmem:[#allocation6 + $0x500] sm:$0xff]
    %v454 = vld [vmem:[#allocation6 + $0x510] sm:$0xff]
    %v455 = vld [vmem:[#allocation6 + $0x520] sm:$0xff]
    %v456 = vld [vmem:[#allocation6 + $0x530] sm:$0xff]
    %v457 = vld [vmem:[%s2 + $0x5] sm:$0x1]
    %v459 = vlaneseq
    %v460 = vshrl.u32 %v459, 7
    %v461 = vsub.s32 0, %v460
    %v462 = vrot.slane %v457, %v461
    %464 = vmatprep.subr.mxu0 0.0
    %465 = vmatpush1.msra.mxu0 %v441
    %466 = vmatprep.subr.mxu0 0.0
    %467 = vmatpush1.msra.mxu0 %v442
    %468 = vmatprep.subr.mxu0 0.0
    %469 = vmatpush1.msra.mxu0 %v443
    %470 = vmatprep.subr.mxu0 0.0
    %471 = vmatpush1.msra.mxu0 %v444
    %472 = vmatprep.subr.mxu0 0.0
    %473 = vmatpush1.msra.mxu0 %v445
    %474 = vmatprep.subr.mxu0 0.0
    %475 = vmatpush1.msra.mxu0 %v446
    %476 = vmatprep.subr.mxu0 0.0
    %477 = vmatpush1.msra.mxu0 %v447
    %478 = vmatprep.subr.mxu0 0.0
    %479 = vmatpush1.msra.mxu0 %v448
    %480 = vmatprep.subr.mxu0 0.0
    %481 = vmatpush1.msra.mxu0 %v449
    %482 = vmatprep.subr.mxu0 0.0
    %483 = vmatpush1.msra.mxu0 %v450
    %484 = vmatprep.subr.mxu0 0.0
    %485 = vmatpush1.msra.mxu0 %v451
    %486 = vmatprep.subr.mxu0 0.0
    %487 = vmatpush1.msra.mxu0 %v452
    %488 = vmatprep.subr.mxu0 0.0
    %489 = vmatpush1.msra.mxu0 %v453
    %490 = vmatprep.subr.mxu0 0.0
    %491 = vmatpush1.msra.mxu0 %v454
    %492 = vmatprep.subr.mxu0 0.0
    %493 = vmatpush1.msra.mxu0 %v455
    %494 = vmatprep.subr.mxu0 0.0
    %495 = vmatpush1.msra.mxu0 %v456
    %496 = vmatprep.subr.mxu0 0.0
    %497 = vmatpush1.msra.mxu0 0.0
    %498 = vmatprep.subr.mxu0 0.0
    %499 = vmatpush1.msra.mxu0 0.0
    %500 = vmatprep.subr.mxu0 0.0
    %501 = vmatpush1.msra.mxu0 0.0
    %502 = vmatprep.subr.mxu0 0.0
    %503 = vmatpush1.msra.mxu0 0.0
    %504 = vmatprep.subr.mxu0 0.0
    %505 = vmatpush1.msra.mxu0 0.0
    %506 = vmatprep.subr.mxu0 0.0
    %507 = vmatpush1.msra.mxu0 0.0
    %508 = vmatprep.subr.mxu0 0.0
    %509 = vmatpush1.msra.mxu0 0.0
    %510 = vmatprep.subr.mxu0 0.0
    %511 = vmatpush1.msra.mxu0 0.0
    %512 = vmatprep.subr.mxu0 0.0
    %513 = vmatpush1.msra.mxu0 0.0
    %514 = vmatprep.subr.mxu0 0.0
    %515 = vmatpush1.msra.mxu0 0.0
    %516 = vmatprep.subr.mxu0 0.0
    %517 = vmatpush1.msra.mxu0 0.0
    %518 = vmatprep.subr.mxu0 0.0
    %519 = vmatpush1.msra.mxu0 0.0
    %520 = vmatprep.subr.mxu0 0.0
    %521 = vmatpush1.msra.mxu0 0.0
    %522 = vmatprep.subr.mxu0 0.0
    %523 = vmatpush1.msra.mxu0 0.0
    %524 = vmatprep.subr.mxu0 0.0
    %525 = vmatpush1.msra.mxu0 0.0
    %526 = vmatprep.subr.mxu0 0.0
    %527 = vmatpush1.msra.mxu0 0.0
    %528 = vmatprep.mubr.f32.mxu0 0.0
    %529 = vmatmul.mubr.f32.gmra.mrb[0].mxu0 %v440
    %v530 = vpop.f32.mrb[0].mxu0
    %v531 = vadd.f32 %v462, %v530
    %v532 = vpop.f32.mrb[0].mxu0
    %533 = vdwg.mxu0
    %s534 = sld [smem:[#allocation2]]
    %v535 = vtanh.pop %v531
    %v536 = vstv %s534
    %v537 = vmul.f32 %v536, %v535
    %538 = vst [vmem:[#allocation8] sm:$0xff] %v537
    // Predicated region
    $region26: #{tpu_custom_call.1} parent=1 // pred_check
      _
    $region27: #{tpu_custom_call.1} parent=1 // pred_check_branch
      %540 = sbr.rel (0) target = $region29
    $region28: #{tpu_custom_call.1} parent=1 // pred_region
      %s542 = ssub.s32 128, 128
      %543 = vsyncadd [#allocation5], %s542
      %s545 = sshll.u32 [#allocation8], 4
      %s546 = int_to_ptr.vmem [resolvable:$true] %s545
      %548 = dma.vmem_to_hbm [thread:$0]  %s546, 128, %s4, [#allocation5]
    $region29: #{tpu_custom_call.1} parent=1 // pred_fallthru
      _
    // Predicated region
    $region30: #{tpu_custom_call.1} parent=1 // pred_check
      _
    $region31: #{tpu_custom_call.1} parent=1 // pred_check_branch
      %550 = sbr.rel (0) target = $region33
    $region32: #{tpu_custom_call.1} parent=1 // pred_region
      %551 = dma.done [#allocation5], 128
    $region33: #{tpu_custom_call.1} parent=1 // pred_fallthru
      _
    %552 = vsyncpa [#allocation4], 1
    %553 = vsyncpa [#allocation7], 1
    %554 = vsyncpa [#allocation5], 1

</llo_original>
